<compile_context>
chip_gen: v6e
topology: v6e:2x2x1
jax: 0.10.0
libtpu: 0.0.40
codegen_flags: <defaults>
</compile_context>

<pallas_src>
import jax
import jax.numpy as jnp
from jax.experimental import pallas as pl
from jax.experimental.pallas import tpu as pltpu

FEATURES = 1000      # output size of any torchvision pretrained model
F_PAD = 1024         # FEATURES rounded up to a lane multiple (8 * 128)
LINEAR_SIZE = 32     # "linear_size" constructor argument

# Batch tile: double-buffered feats tile = 2 * TM * F_PAD * 2 B (bf16)
#   TM=1024 -> 4 MiB, comfortably inside default scoped VMEM on every
#   generation (v5e/v6e 128 MiB phys, v7x 64 MiB phys).  Raise to ~2048 on
#   v7x or 2048-4096 on v5e/v6e to shave per-grid-step overhead further.
DEFAULT_BLOCK_BATCH = 1024


def _round_up(n, m):
    return ((n + m - 1) // m) * m


def _head_kernel(w_ref, b_ref, f_ref, o_ref):
    """sigmoid(feats @ W_eff + b_eff) for one batch tile, lane-dense output."""
    # NT matmul on the MXU: (1, F) · (TM, F)^T -> (1, TM), f32 accumulation.
    logit = jax.lax.dot_general(
        w_ref[...], f_ref[...],
        dimension_numbers=(((1,), (1,)), ((), ())),
        preferred_element_type=jnp.float32)
    logit = logit + b_ref[0, 0]           # scalar fused bias from SMEM
    o_ref[...] = jax.nn.sigmoid(logit)    # exp on the EUP, f32 epilogue


def exact_classifier_head(feats, w1, b1, w2, b2,
                          block_batch=DEFAULT_BLOCK_BATCH):
    """feats: (B, 1000) f32 -> (B, 1) f32 sigmoid probabilities."""
    B, F = feats.shape

    # --- algebraic fusion of linear1 -> linear2 (no activation in between) ---
    w_eff = w1 @ w2                                   # (F, 1) f32
    b_eff = (b1 @ w2 + b2).astype(jnp.float32)        # (1, 1) f32

    # --- layout / dtype plumbing (plain-XLA glue) ---
    tm = min(block_batch, _round_up(B, 128))          # lane-multiple tile
    b_pad = _round_up(B, tm)
    feats_p = jnp.pad(feats.astype(jnp.bfloat16),
                      ((0, b_pad - B), (0, F_PAD - F)))        # (B_pad, F_PAD)
    w_t = jnp.pad(w_eff, ((0, F_PAD - F), (0, 0))).T.astype(jnp.bfloat16)  # (1, F_PAD)

    num_tiles = b_pad // tm
    cost = pl.CostEstimate(
        flops=2 * b_pad * F_PAD,
        transcendentals=b_pad,
        bytes_accessed=b_pad * F_PAD * 2 + F_PAD * 2 + b_pad * 4 + 4)

    out = pl.pallas_call(
        _head_kernel,
        out_shape=jax.ShapeDtypeStruct((1, b_pad), jnp.float32),
        grid=(num_tiles,),
        in_specs=[
            # fused weight: constant index_map -> stays resident in VMEM
            pl.BlockSpec((1, F_PAD), lambda i: (0, 0)),
            # fused scalar bias: whole (1,1) array in SMEM (no VMEM DMA pair)
            pl.BlockSpec(memory_space=pltpu.MemorySpace.SMEM),
            # streamed feats tile (double-buffered by the Pallas pipeline)
            pl.BlockSpec((tm, F_PAD), lambda i: (i, 0)),
        ],
        # lane-dense output slab (1, TM): unmasked full-lane stores
        out_specs=pl.BlockSpec((1, tm), lambda i: (0, i)),
        compiler_params=pltpu.CompilerParams(
            dimension_semantics=("parallel",)),
        cost_estimate=cost,
    )(w_t, b_eff, feats_p)

    return out[0, :B].reshape(B, 1)


def pretrained_stub(x, proj):
    """Deterministic stand-in for the pretrained component: (B,C,H,W) -> (B,1000)."""
    # TODO(synk): real MobileNetV3-Large backbone (pretrained=True) is not
    # reproducible without a checkpoint; replaced by GAP + fixed projection.
    pooled = jnp.mean(x, axis=(2, 3))            # (B, C) global average pool
    return pooled @ proj                          # (B, 1000)


def exact_classifier_forward(x, params):
    feats = pretrained_stub(x, params["proj"])                    # glue
    return exact_classifier_head(feats, params["w1"], params["b1"],
                                 params["w2"], params["b2"])      # Pallas


def init_params(key, in_channels=3, linear_size=LINEAR_SIZE):
    k_proj, k_w1, k_b1, k_w2, k_b2 = jax.random.split(key, 5)
    proj = jax.random.normal(k_proj, (in_channels, FEATURES), jnp.float32) * 0.05
    w1 = jax.random.normal(k_w1, (FEATURES, linear_size), jnp.float32) * 0.02
    b1 = jax.random.normal(k_b1, (1, linear_size), jnp.float32) * 0.01
    w2 = jax.random.normal(k_w2, (linear_size, 1), jnp.float32) * 0.02
    b2 = jax.random.normal(k_b2, (1, 1), jnp.float32) * 0.01
    return {"proj": proj, "w1": w1, "b1": b1, "w2": w2, "b2": b2}


if __name__ == "__main__":
    key = jax.random.PRNGKey(0)
    k_x, k_p = jax.random.split(key)

    # Small NCHW image batch, consistent with an image-classifier input.
    x = jax.random.normal(k_x, (2, 3, 16, 16), jnp.float32)
    params = init_params(k_p)

    fwd = jax.jit(exact_classifier_forward)
    out = jax.block_until_ready(fwd(x, params))

    # Pure-JAX reference with the original (un-fused, f32) module semantics.
    feats = pretrained_stub(x, params["proj"])
    ref = jax.nn.sigmoid(
        (feats @ params["w1"] + params["b1"]) @ params["w2"] + params["b2"])

    assert out.shape == (2, 1)
    assert jnp.allclose(out, ref, atol=2e-3, rtol=0), (
        f"max abs err {jnp.max(jnp.abs(out - ref))}")

    print("KERNEL_OK")
</pallas_src>

<mosaic_0001>
module attributes {stable_mosaic.version = 11 : i64} {
  func.func @_head_kernel(%arg0: i32, %arg1: memref<1x1024xbf16, #tpu.memory_space<vmem>>, %arg2: memref<1x1xf32, #tpu.memory_space<smem>>, %arg3: memref<128x1024xbf16, #tpu.memory_space<vmem>>, %arg4: memref<1x128xf32, #tpu.memory_space<vmem>>) attributes {dimension_semantics = [#tpu.dimension_semantics<parallel>], iteration_bounds = array<i64: 1>, scalar_prefetch = 0 : i64, scratch_operands = 0 : i64, tpu.core_type = #tpu.core_type<tc>, window_params = [{pipeline_mode = #tpu.pipeline_mode<synchronous>, transform_indices = @transform_0, window_bounds = array<i64: 1, 1024>}, {transform_indices = @transform_1, window_bounds = array<i64: 1, 1>}, {transform_indices = @transform_2, window_bounds = array<i64: 128, 1024>}, {transform_indices = @transform_3, window_bounds = array<i64: 1, 128>}]} {
    %c0 = arith.constant 0 : index
    %c0_0 = arith.constant 0 : index
    %0 = vector.load %arg1[%c0, %c0_0] : memref<1x1024xbf16, #tpu.memory_space<vmem>>, vector<1x1024xbf16>
    %c0_1 = arith.constant 0 : index
    %c0_2 = arith.constant 0 : index
    %1 = vector.load %arg3[%c0_1, %c0_2] : memref<128x1024xbf16, #tpu.memory_space<vmem>>, vector<128x1024xbf16>
    %cst = arith.constant dense<0.000000e+00> : vector<1x128xf32>
    %2 = tpu.matmul %0, %1, %cst {dimension_numbers = #tpu.dot_dimension_numbers<[1], [1], [0], [0], [0, 0, 1, 0], [], []>} : vector<1x1024xbf16>, vector<128x1024xbf16>, vector<1x128xf32> -> vector<1x128xf32>
    %c0_3 = arith.constant 0 : index
    %c0_4 = arith.constant 0 : index
    %3 = memref.load %arg2[%c0_3, %c0_4] : memref<1x1xf32, #tpu.memory_space<smem>>
    %4 = vector.broadcast %3 : f32 to vector<1x128xf32>
    %5 = arith.addf %2, %4 : vector<1x128xf32>
    %6 = arith.negf %5 : vector<1x128xf32>
    %7 = math.exp %6 : vector<1x128xf32>
    %cst_5 = arith.constant 1.000000e+00 : f32
    %8 = vector.broadcast %cst_5 : f32 to vector<1x128xf32>
    %9 = arith.addf %8, %7 : vector<1x128xf32>
    %10 = arith.divf %8, %9 : vector<1x128xf32>
    %c0_6 = arith.constant 0 : index
    %c0_7 = arith.constant 0 : index
    %11 = vector.load %arg4[%c0_6, %c0_7] : memref<1x128xf32, #tpu.memory_space<vmem>>, vector<1x128xf32>
    tpu.vector_store %arg4[%c0_6, %c0_7], %10 {strides = array<i32>} : memref<1x128xf32, #tpu.memory_space<vmem>>, vector<1x128xf32>,
    return
  }
  func.func @transform_0(%arg0: i32) -> (i32, i32) {
    %c0_i32 = arith.constant 0 : i32
    %c0_i32_0 = arith.constant 0 : i32
    %c0_i32_1 = arith.constant 0 : i32
    return %c0_i32, %c0_i32_0 : i32, i32
  }
  func.func @transform_1(%arg0: i32) -> (i32, i32) {
    %c0_i32 = arith.constant 0 : i32
    %c0_i32_0 = arith.constant 0 : i32
    %c0_i32_1 = arith.constant 0 : i32
    return %c0_i32, %c0_i32_0 : i32, i32
  }
  func.func @transform_2(%arg0: i32) -> (i32, i32) {
    %c0_i32 = arith.constant 0 : i32
    %c0_i32_0 = arith.constant 0 : i32
    return %arg0, %c0_i32 : i32, i32
  }
  func.func @transform_3(%arg0: i32) -> (i32, i32) {
    %c0_i32 = arith.constant 0 : i32
    %c0_i32_0 = arith.constant 0 : i32
    return %c0_i32, %arg0 : i32, i32
  }
}

</mosaic_0001>

<llo_original>
// kernel: exact_classifier_forward.1
$region0: #{exact_classifier_forward.1}
  #allocation0 [shape = 'u32[]', space=smem, size = 0x4, offset = 0x4, fixed_abs, tag = 'smem constant byte address 0x4 - core index']
  #allocation1 [shape = 'u32[144,128]{1,0:T(1,128)}', space=vmem, size = 0x12000, scoped, tag = 'internal scratch']
  #allocation2 [shape = 'f32[1,1]{1,0:T(1,128)S(6)}', space=smem, size = 0x200, scoped, tag = 'scoped memory for exact_classifier_forward.1']
  %s0 = inlined_call_operand.vmem [shape: bf16[1,1024], index: 0, kind: input, shape index: {}]
  %s1 = inlined_call_operand.<no memory space> [shape: f32[1,1], index: 1, kind: input, shape index: {}]
  %s2 = inlined_call_operand.vmem [shape: bf16[128,1024], index: 2, kind: input, shape index: {}]
  %s3 = inlined_call_operand.vmem [shape: f32[1,128], index: 3, kind: output, shape index: {}]
  %s4 = sld [smem:[#allocation0]]
  $region22: #{exact_classifier_forward.1} parent=0
    _
  %s6 = ssub.s32 1, %s4
  %s7 = scalar_select 0, %s6, %s4
  %8 = sst [smem:[#allocation2]] %s1
  // Predicated region
  $region2: #{exact_classifier_forward.1} parent=0 // pred_check
    _
  $region3: #{exact_classifier_forward.1} parent=0 // pred_check_branch
    %10 = sbr.rel (0) target = $region5
  $region4: #{exact_classifier_forward.1} parent=0 // pred_region
    _
  $region5: #{exact_classifier_forward.1} parent=0 // pred_fallthru
    _
  // Predicated region
  $region6: #{exact_classifier_forward.1} parent=0 // pred_check
    _
  $region7: #{exact_classifier_forward.1} parent=0 // pred_check_branch
    %12 = sbr.rel (0) target = $region9
  $region8: #{exact_classifier_forward.1} parent=0 // pred_region
    _
  $region9: #{exact_classifier_forward.1} parent=0 // pred_fallthru
    _
  // Predicated region
  $region10: #{exact_classifier_forward.1} parent=0 // pred_check
    _
  $region11: #{exact_classifier_forward.1} parent=0 // pred_check_branch
    %14 = sbr.rel (0) target = $region13
  $region12: #{exact_classifier_forward.1} parent=0 // pred_region
    _
  $region13: #{exact_classifier_forward.1} parent=0 // pred_fallthru
    _
  %v16 = vld [vmem:[%s0] sm:$0xff]
  %v17 = vld [vmem:[%s2] sm:$0xff]
  %v18 = vld [vmem:[%s2 + $0x8] sm:$0xff]
  %v19 = vld [vmem:[%s2 + $0x10] sm:$0xff]
  %v20 = vld [vmem:[%s2 + $0x18] sm:$0xff]
  %v21 = vld [vmem:[%s2 + $0x20] sm:$0xff]
  %v22 = vld [vmem:[%s2 + $0x28] sm:$0xff]
  %v23 = vld [vmem:[%s2 + $0x30] sm:$0xff]
  %v24 = vld [vmem:[%s2 + $0x38] sm:$0xff]
  %v25 = vld [vmem:[%s2 + $0x40] sm:$0xff]
  %v26 = vld [vmem:[%s2 + $0x48] sm:$0xff]
  %v27 = vld [vmem:[%s2 + $0x50] sm:$0xff]
  %v28 = vld [vmem:[%s2 + $0x58] sm:$0xff]
  %v29 = vld [vmem:[%s2 + $0x60] sm:$0xff]
  %v30 = vld [vmem:[%s2 + $0x68] sm:$0xff]
  %v31 = vld [vmem:[%s2 + $0x70] sm:$0xff]
  %v32 = vld [vmem:[%s2 + $0x78] sm:$0xff]
  %v33 = vld [vmem:[%s2 + $0x80] sm:$0xff]
  %v34 = vld [vmem:[%s2 + $0x88] sm:$0xff]
  %v35 = vld [vmem:[%s2 + $0x90] sm:$0xff]
  %v36 = vld [vmem:[%s2 + $0x98] sm:$0xff]
  %v37 = vld [vmem:[%s2 + $0xa0] sm:$0xff]
  %v38 = vld [vmem:[%s2 + $0xa8] sm:$0xff]
  %v39 = vld [vmem:[%s2 + $0xb0] sm:$0xff]
  %v40 = vld [vmem:[%s2 + $0xb8] sm:$0xff]
  %v41 = vld [vmem:[%s2 + $0xc0] sm:$0xff]
  %v42 = vld [vmem:[%s2 + $0xc8] sm:$0xff]
  %v43 = vld [vmem:[%s2 + $0xd0] sm:$0xff]
  %v44 = vld [vmem:[%s2 + $0xd8] sm:$0xff]
  %v45 = vld [vmem:[%s2 + $0xe0] sm:$0xff]
  %v46 = vld [vmem:[%s2 + $0xe8] sm:$0xff]
  %v47 = vld [vmem:[%s2 + $0xf0] sm:$0xff]
  %v48 = vld [vmem:[%s2 + $0xf8] sm:$0xff]
  %v49 = vld [vmem:[%s2 + $0x100] sm:$0xff]
  %v50 = vld [vmem:[%s2 + $0x108] sm:$0xff]
  %v51 = vld [vmem:[%s2 + $0x110] sm:$0xff]
  %v52 = vld [vmem:[%s2 + $0x118] sm:$0xff]
  %v53 = vld [vmem:[%s2 + $0x120] sm:$0xff]
  %v54 = vld [vmem:[%s2 + $0x128] sm:$0xff]
  %v55 = vld [vmem:[%s2 + $0x130] sm:$0xff]
  %v56 = vld [vmem:[%s2 + $0x138] sm:$0xff]
  %v57 = vld [vmem:[%s2 + $0x140] sm:$0xff]
  %v58 = vld [vmem:[%s2 + $0x148] sm:$0xff]
  %v59 = vld [vmem:[%s2 + $0x150] sm:$0xff]
  %v60 = vld [vmem:[%s2 + $0x158] sm:$0xff]
  %v61 = vld [vmem:[%s2 + $0x160] sm:$0xff]
  %v62 = vld [vmem:[%s2 + $0x168] sm:$0xff]
  %v63 = vld [vmem:[%s2 + $0x170] sm:$0xff]
  %v64 = vld [vmem:[%s2 + $0x178] sm:$0xff]
  %v65 = vld [vmem:[%s2 + $0x180] sm:$0xff]
  %v66 = vld [vmem:[%s2 + $0x188] sm:$0xff]
  %v67 = vld [vmem:[%s2 + $0x190] sm:$0xff]
  %v68 = vld [vmem:[%s2 + $0x198] sm:$0xff]
  %v69 = vld [vmem:[%s2 + $0x1a0] sm:$0xff]
  %v70 = vld [vmem:[%s2 + $0x1a8] sm:$0xff]
  %v71 = vld [vmem:[%s2 + $0x1b0] sm:$0xff]
  %v72 = vld [vmem:[%s2 + $0x1b8] sm:$0xff]
  %v73 = vld [vmem:[%s2 + $0x1c0] sm:$0xff]
  %v74 = vld [vmem:[%s2 + $0x1c8] sm:$0xff]
  %v75 = vld [vmem:[%s2 + $0x1d0] sm:$0xff]
  %v76 = vld [vmem:[%s2 + $0x1d8] sm:$0xff]
  %v77 = vld [vmem:[%s2 + $0x1e0] sm:$0xff]
  %v78 = vld [vmem:[%s2 + $0x1e8] sm:$0xff]
  %v79 = vld [vmem:[%s2 + $0x1f0] sm:$0xff]
  %v80 = vld [vmem:[%s2 + $0x1f8] sm:$0xff]
  %s81 = sld [smem:[#allocation2]]
  %v82 = vstv %s81
  %v84 = vcombine.high %v16, %v16
  %v86 = vunpack.c.l.s4 1966171168
  %v87 = vunpack.c.0.s8 %v86
  %v88 = vlaneseq
  %v89 = vshrl.u32 %v88, 7
  %v90 = vsub.s32 %v87, %v89
  %v91 = vrot.slane %v16, %v90
  %v93 = vunpack.c.l.s4 1966171168
  %v94 = vunpack.c.0.s8 %v93
  %v95 = vlaneseq
  %v96 = vshrl.u32 %v95, 7
  %v97 = vsub.s32 %v94, %v96
  %v98 = vrot.slane %v84, %v97
  %v99 = vcombine.high %v91, %v91
  %v100 = vcombine.high %v98, %v98
  %v102 = vunpack.c.l.s4 1966171168
  %v103 = vunpack.c.0.s8 %v102
  %v104 = vlaneseq
  %v105 = vshrl.u32 %v104, 7
  %v106 = vsub.s32 %v103, %v105
  %v107 = vrot.slane %v91, %v106
  %v109 = vunpack.c.l.s4 1966171168
  %v110 = vunpack.c.0.s8 %v109
  %v111 = vlaneseq
  %v112 = vshrl.u32 %v111, 7
  %v113 = vsub.s32 %v110, %v112
  %v114 = vrot.slane %v98, %v113
  %v116 = vunpack.c.l.s4 1966171168
  %v117 = vunpack.c.0.s8 %v116
  %v118 = vlaneseq
  %v119 = vshrl.u32 %v118, 7
  %v120 = vsub.s32 %v117, %v119
  %v121 = vrot.slane %v99, %v120
  %v123 = vunpack.c.l.s4 1966171168
  %v124 = vunpack.c.0.s8 %v123
  %v125 = vlaneseq
  %v126 = vshrl.u32 %v125, 7
  %v127 = vsub.s32 %v124, %v126
  %v128 = vrot.slane %v100, %v127
  %v129 = vcombine.high %v107, %v107
  %v130 = vcombine.high %v114, %v114
  %v131 = vcombine.high %v121, %v121
  %v132 = vcombine.high %v128, %v128
  %v205 = vunpack.c.l.b16 %v17
  %v206 = vunpack.c.h.b16 %v17
  %v207 = vunpack.c.l.b16 %v18
  %v208 = vunpack.c.h.b16 %v18
  %v209 = vunpack.c.l.b16 %v19
  %v210 = vunpack.c.h.b16 %v19
  %v211 = vunpack.c.l.b16 %v20
  %v212 = vunpack.c.h.b16 %v20
  %v213 = vunpack.c.l.b16 %v21
  %v214 = vunpack.c.h.b16 %v21
  %v215 = vunpack.c.l.b16 %v22
  %v216 = vunpack.c.h.b16 %v22
  %v217 = vunpack.c.l.b16 %v23
  %v218 = vunpack.c.h.b16 %v23
  %v219 = vunpack.c.l.b16 %v24
  %v220 = vunpack.c.h.b16 %v24
  %v221 = vunpack.c.l.b16 %v25
  %v222 = vunpack.c.h.b16 %v25
  %v223 = vunpack.c.l.b16 %v26
  %v224 = vunpack.c.h.b16 %v26
  %v225 = vunpack.c.l.b16 %v27
  %v226 = vunpack.c.h.b16 %v27
  %v227 = vunpack.c.l.b16 %v28
  %v228 = vunpack.c.h.b16 %v28
  %v229 = vunpack.c.l.b16 %v29
  %v230 = vunpack.c.h.b16 %v29
  %v231 = vunpack.c.l.b16 %v30
  %v232 = vunpack.c.h.b16 %v30
  %v233 = vunpack.c.l.b16 %v31
  %v234 = vunpack.c.h.b16 %v31
  %v235 = vunpack.c.l.b16 %v32
  %v236 = vunpack.c.h.b16 %v32
  %v237 = vunpack.c.l.b16 %v33
  %v238 = vunpack.c.h.b16 %v33
  %v239 = vunpack.c.l.b16 %v34
  %v240 = vunpack.c.h.b16 %v34
  %v241 = vunpack.c.l.b16 %v35
  %v242 = vunpack.c.h.b16 %v35
  %v243 = vunpack.c.l.b16 %v36
  %v244 = vunpack.c.h.b16 %v36
  %v245 = vunpack.c.l.b16 %v37
  %v246 = vunpack.c.h.b16 %v37
  %v247 = vunpack.c.l.b16 %v38
  %v248 = vunpack.c.h.b16 %v38
  %v249 = vunpack.c.l.b16 %v39
  %v250 = vunpack.c.h.b16 %v39
  %v251 = vunpack.c.l.b16 %v40
  %v252 = vunpack.c.h.b16 %v40
  %v253 = vunpack.c.l.b16 %v41
  %v254 = vunpack.c.h.b16 %v41
  %v255 = vunpack.c.l.b16 %v42
  %v256 = vunpack.c.h.b16 %v42
  %v257 = vunpack.c.l.b16 %v43
  %v258 = vunpack.c.h.b16 %v43
  %v259 = vunpack.c.l.b16 %v44
  %v260 = vunpack.c.h.b16 %v44
  %v261 = vunpack.c.l.b16 %v45
  %v262 = vunpack.c.h.b16 %v45
  %v263 = vunpack.c.l.b16 %v46
  %v264 = vunpack.c.h.b16 %v46
  %v265 = vunpack.c.l.b16 %v47
  %v266 = vunpack.c.h.b16 %v47
  %v267 = vunpack.c.l.b16 %v48
  %v268 = vunpack.c.h.b16 %v48
  %v269 = vunpack.c.l.b16 %v49
  %v270 = vunpack.c.h.b16 %v49
  %v271 = vunpack.c.l.b16 %v50
  %v272 = vunpack.c.h.b16 %v50
  %v273 = vunpack.c.l.b16 %v51
  %v274 = vunpack.c.h.b16 %v51
  %v275 = vunpack.c.l.b16 %v52
  %v276 = vunpack.c.h.b16 %v52
  %v277 = vunpack.c.l.b16 %v53
  %v278 = vunpack.c.h.b16 %v53
  %v279 = vunpack.c.l.b16 %v54
  %v280 = vunpack.c.h.b16 %v54
  %v281 = vunpack.c.l.b16 %v55
  %v282 = vunpack.c.h.b16 %v55
  %v283 = vunpack.c.l.b16 %v56
  %v284 = vunpack.c.h.b16 %v56
  %v285 = vunpack.c.l.b16 %v57
  %v286 = vunpack.c.h.b16 %v57
  %v287 = vunpack.c.l.b16 %v58
  %v288 = vunpack.c.h.b16 %v58
  %v289 = vunpack.c.l.b16 %v59
  %v290 = vunpack.c.h.b16 %v59
  %v291 = vunpack.c.l.b16 %v60
  %v292 = vunpack.c.h.b16 %v60
  %v293 = vunpack.c.l.b16 %v61
  %v294 = vunpack.c.h.b16 %v61
  %v295 = vunpack.c.l.b16 %v62
  %v296 = vunpack.c.h.b16 %v62
  %v297 = vunpack.c.l.b16 %v63
  %v298 = vunpack.c.h.b16 %v63
  %v299 = vunpack.c.l.b16 %v64
  %v300 = vunpack.c.h.b16 %v64
  %v301 = vunpack.c.l.b16 %v65
  %v302 = vunpack.c.h.b16 %v65
  %v303 = vunpack.c.l.b16 %v66
  %v304 = vunpack.c.h.b16 %v66
  %v305 = vunpack.c.l.b16 %v67
  %v306 = vunpack.c.h.b16 %v67
  %v307 = vunpack.c.l.b16 %v68
  %v308 = vunpack.c.h.b16 %v68
  %v309 = vunpack.c.l.b16 %v69
  %v310 = vunpack.c.h.b16 %v69
  %v311 = vunpack.c.l.b16 %v70
  %v312 = vunpack.c.h.b16 %v70
  %v313 = vunpack.c.l.b16 %v71
  %v314 = vunpack.c.h.b16 %v71
  %v315 = vunpack.c.l.b16 %v72
  %v316 = vunpack.c.h.b16 %v72
  %v317 = vunpack.c.l.b16 %v73
  %v318 = vunpack.c.h.b16 %v73
  %v319 = vunpack.c.l.b16 %v74
  %v320 = vunpack.c.h.b16 %v74
  %v321 = vunpack.c.l.b16 %v75
  %v322 = vunpack.c.h.b16 %v75
  %v323 = vunpack.c.l.b16 %v76
  %v324 = vunpack.c.h.b16 %v76
  %v325 = vunpack.c.l.b16 %v77
  %v326 = vunpack.c.h.b16 %v77
  %v327 = vunpack.c.l.b16 %v78
  %v328 = vunpack.c.h.b16 %v78
  %v329 = vunpack.c.l.b16 %v79
  %v330 = vunpack.c.h.b16 %v79
  %v331 = vunpack.c.l.b16 %v80
  %v332 = vunpack.c.h.b16 %v80
  %v333 = vpack.c.b16 %v213, %v205
  %v334 = vpack.c.b16 %v214, %v206
  %v335 = vpack.c.b16 %v215, %v207
  %v336 = vpack.c.b16 %v216, %v208
  %v337 = vpack.c.b16 %v217, %v209
  %v338 = vpack.c.b16 %v218, %v210
  %v339 = vpack.c.b16 %v219, %v211
  %v340 = vpack.c.b16 %v220, %v212
  %v341 = vpack.c.b16 %v229, %v221
  %v342 = vpack.c.b16 %v230, %v222
  %v343 = vpack.c.b16 %v231, %v223
  %v344 = vpack.c.b16 %v232, %v224
  %v345 = vpack.c.b16 %v233, %v225
  %v346 = vpack.c.b16 %v234, %v226
  %v347 = vpack.c.b16 %v235, %v227
  %v348 = vpack.c.b16 %v236, %v228
  %v349 = vpack.c.b16 %v245, %v237
  %v350 = vpack.c.b16 %v246, %v238
  %v351 = vpack.c.b16 %v247, %v239
  %v352 = vpack.c.b16 %v248, %v240
  %v353 = vpack.c.b16 %v249, %v241
  %v354 = vpack.c.b16 %v250, %v242
  %v355 = vpack.c.b16 %v251, %v243
  %v356 = vpack.c.b16 %v252, %v244
  %v357 = vpack.c.b16 %v261, %v253
  %v358 = vpack.c.b16 %v262, %v254
  %v359 = vpack.c.b16 %v263, %v255
  %v360 = vpack.c.b16 %v264, %v256
  %v361 = vpack.c.b16 %v265, %v257
  %v362 = vpack.c.b16 %v266, %v258
  %v363 = vpack.c.b16 %v267, %v259
  %v364 = vpack.c.b16 %v268, %v260
  %v365 = vpack.c.b16 %v277, %v269
  %v366 = vpack.c.b16 %v278, %v270
  %v367 = vpack.c.b16 %v279, %v271
  %v368 = vpack.c.b16 %v280, %v272
  %v369 = vpack.c.b16 %v281, %v273
  %v370 = vpack.c.b16 %v282, %v274
  %v371 = vpack.c.b16 %v283, %v275
  %v372 = vpack.c.b16 %v284, %v276
  %v373 = vpack.c.b16 %v293, %v285
  %v374 = vpack.c.b16 %v294, %v286
  %v375 = vpack.c.b16 %v295, %v287
  %v376 = vpack.c.b16 %v296, %v288
  %v377 = vpack.c.b16 %v297, %v289
  %v378 = vpack.c.b16 %v298, %v290
  %v379 = vpack.c.b16 %v299, %v291
  %v380 = vpack.c.b16 %v300, %v292
  %v381 = vpack.c.b16 %v309, %v301
  %v382 = vpack.c.b16 %v310, %v302
  %v383 = vpack.c.b16 %v311, %v303
  %v384 = vpack.c.b16 %v312, %v304
  %v385 = vpack.c.b16 %v313, %v305
  %v386 = vpack.c.b16 %v314, %v306
  %v387 = vpack.c.b16 %v315, %v307
  %v388 = vpack.c.b16 %v316, %v308
  %v389 = vpack.c.b16 %v325, %v317
  %v390 = vpack.c.b16 %v326, %v318
  %v391 = vpack.c.b16 %v327, %v319
  %v392 = vpack.c.b16 %v328, %v320
  %v393 = vpack.c.b16 %v329, %v321
  %v394 = vpack.c.b16 %v330, %v322
  %v395 = vpack.c.b16 %v331, %v323
  %v396 = vpack.c.b16 %v332, %v324
  %461 = vmatprep.subr.bf16.mxu0 %v390
  %462 = vmatpush1.bf16.xpose.msra.mxu0 %v389
  %463 = vmatprep.subr.bf16.mxu0 %v382
  %464 = vmatpush1.bf16.xpose.msra.mxu0 %v381
  %465 = vmatprep.subr.bf16.mxu0 %v374
  %466 = vmatpush1.bf16.xpose.msra.mxu0 %v373
  %467 = vmatprep.subr.bf16.mxu0 %v366
  %468 = vmatpush1.bf16.xpose.msra.mxu0 %v365
  %469 = vmatprep.subr.bf16.mxu0 %v358
  %470 = vmatpush1.bf16.xpose.msra.mxu0 %v357
  %471 = vmatprep.subr.bf16.mxu0 %v350
  %472 = vmatpush1.bf16.xpose.msra.mxu0 %v349
  %473 = vmatprep.subr.bf16.mxu0 %v342
  %474 = vmatpush1.bf16.xpose.msra.mxu0 %v341
  %475 = vmatprep.subr.bf16.mxu0 %v334
  %476 = vmatpush1.bf16.xpose.msra.mxu0 %v333
  %477 = vmatprep.subr.bf16.mxu0 0
  %478 = vmatpush2.bf16.xpose.msra.mxu0 0
  %479 = vmatprep.subr.bf16.mxu0 0
  %480 = vmatpush2.bf16.xpose.msra.mxu0 0
  %481 = vmatprep.subr.bf16.mxu0 0
  %482 = vmatpush2.bf16.xpose.msra.mxu0 0
  %483 = vmatprep.subr.bf16.mxu0 0
  %484 = vmatpush2.bf16.xpose.msra.mxu0 0
  %485 = vmatprep.subr.bf16.mxu0 0
  %486 = vmatpush2.bf16.xpose.msra.mxu0 0
  %487 = vmatprep.subr.bf16.mxu0 0
  %488 = vmatpush2.bf16.xpose.msra.mxu0 0
  %489 = vmatprep.subr.bf16.mxu0 0
  %490 = vmatpush2.bf16.xpose.msra.mxu0 0
  %491 = vmatprep.subr.bf16.mxu0 0
  %492 = vmatpush2.bf16.xpose.msra.mxu0 0
  %493 = vmatprep.mubr.bf16.mxu0 %v121
  %494 = vmatmul.mubr.bf16.gmra.mxu0 %v107
  %v495 = vpop.f32.mrf.mxu0
  %v496 = vadd.f32 %v82, %v495
  %v497 = vpop.f32.mrf.mxu0
  %v498 = vpop.f32.mrf.mxu0
  %v499 = vpop.f32.mrf.mxu0
  %500 = vdwg.mxu0
  %501 = vmatprep.subr.bf16.mxu0 %v392
  %502 = vmatpush1.bf16.xpose.msra.mxu0 %v391
  %503 = vmatprep.subr.bf16.mxu0 %v384
  %504 = vmatpush1.bf16.xpose.msra.mxu0 %v383
  %505 = vmatprep.subr.bf16.mxu0 %v376
  %506 = vmatpush1.bf16.xpose.msra.mxu0 %v375
  %507 = vmatprep.subr.bf16.mxu0 %v368
  %508 = vmatpush1.bf16.xpose.msra.mxu0 %v367
  %509 = vmatprep.subr.bf16.mxu0 %v360
  %510 = vmatpush1.bf16.xpose.msra.mxu0 %v359
  %511 = vmatprep.subr.bf16.mxu0 %v352
  %512 = vmatpush1.bf16.xpose.msra.mxu0 %v351
  %513 = vmatprep.subr.bf16.mxu0 %v344
  %514 = vmatpush1.bf16.xpose.msra.mxu0 %v343
  %515 = vmatprep.subr.bf16.mxu0 %v336
  %516 = vmatpush1.bf16.xpose.msra.mxu0 %v335
  %517 = vmatprep.subr.bf16.mxu0 0
  %518 = vmatpush2.bf16.xpose.msra.mxu0 0
  %519 = vmatprep.subr.bf16.mxu0 0
  %520 = vmatpush2.bf16.xpose.msra.mxu0 0
  %521 = vmatprep.subr.bf16.mxu0 0
  %522 = vmatpush2.bf16.xpose.msra.mxu0 0
  %523 = vmatprep.subr.bf16.mxu0 0
  %524 = vmatpush2.bf16.xpose.msra.mxu0 0
  %525 = vmatprep.subr.bf16.mxu0 0
  %526 = vmatpush2.bf16.xpose.msra.mxu0 0
  %527 = vmatprep.subr.bf16.mxu0 0
  %528 = vmatpush2.bf16.xpose.msra.mxu0 0
  %529 = vmatprep.subr.bf16.mxu0 0
  %530 = vmatpush2.bf16.xpose.msra.mxu0 0
  %531 = vmatprep.subr.bf16.mxu0 0
  %532 = vmatpush2.bf16.xpose.msra.mxu0 0
  %533 = vmatprep.mubr.bf16.mxu0 %v131
  %534 = vmatmul.mubr.bf16.gmra.mxu0 %v129
  %v535 = vpop.f32.mrf.mxu0
  %v536 = vadd.f32 %v496, %v535
  %v537 = vpop.f32.mrf.mxu0
  %v538 = vpop.f32.mrf.mxu0
  %v539 = vpop.f32.mrf.mxu0
  %540 = vdwg.mxu0
  %541 = vmatprep.subr.bf16.mxu0 %v394
  %542 = vmatpush1.bf16.xpose.msra.mxu0 %v393
  %543 = vmatprep.subr.bf16.mxu0 %v386
  %544 = vmatpush1.bf16.xpose.msra.mxu0 %v385
  %545 = vmatprep.subr.bf16.mxu0 %v378
  %546 = vmatpush1.bf16.xpose.msra.mxu0 %v377
  %547 = vmatprep.subr.bf16.mxu0 %v370
  %548 = vmatpush1.bf16.xpose.msra.mxu0 %v369
  %549 = vmatprep.subr.bf16.mxu0 %v362
  %550 = vmatpush1.bf16.xpose.msra.mxu0 %v361
  %551 = vmatprep.subr.bf16.mxu0 %v354
  %552 = vmatpush1.bf16.xpose.msra.mxu0 %v353
  %553 = vmatprep.subr.bf16.mxu0 %v346
  %554 = vmatpush1.bf16.xpose.msra.mxu0 %v345
  %555 = vmatprep.subr.bf16.mxu0 %v338
  %556 = vmatpush1.bf16.xpose.msra.mxu0 %v337
  %557 = vmatprep.subr.bf16.mxu0 0
  %558 = vmatpush2.bf16.xpose.msra.mxu0 0
  %559 = vmatprep.subr.bf16.mxu0 0
  %560 = vmatpush2.bf16.xpose.msra.mxu0 0
  %561 = vmatprep.subr.bf16.mxu0 0
  %562 = vmatpush2.bf16.xpose.msra.mxu0 0
  %563 = vmatprep.subr.bf16.mxu0 0
  %564 = vmatpush2.bf16.xpose.msra.mxu0 0
  %565 = vmatprep.subr.bf16.mxu0 0
  %566 = vmatpush2.bf16.xpose.msra.mxu0 0
  %567 = vmatprep.subr.bf16.mxu0 0
  %568 = vmatpush2.bf16.xpose.msra.mxu0 0
  %569 = vmatprep.subr.bf16.mxu0 0
  %570 = vmatpush2.bf16.xpose.msra.mxu0 0
  %571 = vmatprep.subr.bf16.mxu0 0
  %572 = vmatpush2.bf16.xpose.msra.mxu0 0
  %573 = vmatprep.mubr.bf16.mxu0 %v128
  %574 = vmatmul.mubr.bf16.gmra.mxu0 %v114
  %v575 = vpop.f32.mrf.mxu0
  %v576 = vadd.f32 %v536, %v575
  %v577 = vpop.f32.mrf.mxu0
  %v578 = vpop.f32.mrf.mxu0
  %v579 = vpop.f32.mrf.mxu0
  %580 = vdwg.mxu0
  %581 = vmatprep.subr.bf16.mxu0 %v396
  %582 = vmatpush1.bf16.xpose.msra.mxu0 %v395
  %583 = vmatprep.subr.bf16.mxu0 %v388
  %584 = vmatpush1.bf16.xpose.msra.mxu0 %v387
  %585 = vmatprep.subr.bf16.mxu0 %v380
  %586 = vmatpush1.bf16.xpose.msra.mxu0 %v379
  %587 = vmatprep.subr.bf16.mxu0 %v372
  %588 = vmatpush1.bf16.xpose.msra.mxu0 %v371
  %589 = vmatprep.subr.bf16.mxu0 %v364
  %590 = vmatpush1.bf16.xpose.msra.mxu0 %v363
  %591 = vmatprep.subr.bf16.mxu0 %v356
  %592 = vmatpush1.bf16.xpose.msra.mxu0 %v355
  %593 = vmatprep.subr.bf16.mxu0 %v348
  %594 = vmatpush1.bf16.xpose.msra.mxu0 %v347
  %595 = vmatprep.subr.bf16.mxu0 %v340
  %596 = vmatpush1.bf16.xpose.msra.mxu0 %v339
  %597 = vmatprep.subr.bf16.mxu0 0
  %598 = vmatpush2.bf16.xpose.msra.mxu0 0
  %599 = vmatprep.subr.bf16.mxu0 0
  %600 = vmatpush2.bf16.xpose.msra.mxu0 0
  %601 = vmatprep.subr.bf16.mxu0 0
  %602 = vmatpush2.bf16.xpose.msra.mxu0 0
  %603 = vmatprep.subr.bf16.mxu0 0
  %604 = vmatpush2.bf16.xpose.msra.mxu0 0
  %605 = vmatprep.subr.bf16.mxu0 0
  %606 = vmatpush2.bf16.xpose.msra.mxu0 0
  %607 = vmatprep.subr.bf16.mxu0 0
  %608 = vmatpush2.bf16.xpose.msra.mxu0 0
  %609 = vmatprep.subr.bf16.mxu0 0
  %610 = vmatpush2.bf16.xpose.msra.mxu0 0
  %611 = vmatprep.subr.bf16.mxu0 0
  %612 = vmatpush2.bf16.xpose.msra.mxu0 0
  %613 = vmatprep.mubr.bf16.mxu0 %v132
  %614 = vmatmul.mubr.bf16.gmra.mxu0 %v130
  %v615 = vpop.f32.mrf.mxu0
  %v616 = vadd.f32 %v576, %v615
  %v617 = vpop.f32.mrf.mxu0
  %v618 = vpop.f32.mrf.mxu0
  %v619 = vpop.f32.mrf.mxu0
  %620 = vdwg.mxu0
  %v621 = vxor.u32 %v616, 2147483648
  %v622 = vmul.f32 %v621, 1.442695
  %v623 = vpow.pop %v622
  %v624 = vadd.f32 %v623, 1.0
  %v625 = vrcp.pop %v624
  %v626 = vmul.f32 1.0, %v625
  %627 = vst [vmem:[%s3] sm:$0x1] %v626
  // Predicated region
  $region14: #{exact_classifier_forward.1} parent=0 // pred_check
    _
  $region15: #{exact_classifier_forward.1} parent=0 // pred_check_branch
    %629 = sbr.rel (0) target = $region17
  $region16: #{exact_classifier_forward.1} parent=0 // pred_region
    _
  $region17: #{exact_classifier_forward.1} parent=0 // pred_fallthru
    _
  // Predicated region
  $region18: #{exact_classifier_forward.1} parent=0 // pred_check
    _
  $region19: #{exact_classifier_forward.1} parent=0 // pred_check_branch
    %631 = sbr.rel (0) target = $region21
  $region20: #{exact_classifier_forward.1} parent=0 // pred_region
    _
  $region21: #{exact_classifier_forward.1} parent=0 // pred_fallthru
    _

</llo_original>
